<compile_context>
chip_gen: v5e
topology: v5e:2x2
jax: 0.10.0
libtpu: 0.0.40
codegen_flags: <defaults>
</compile_context>

<pallas_src>
import functools
import math

import jax
import jax.numpy as jnp
from jax.experimental import pallas as pl
from jax.experimental.pallas import tpu as pltpu


def _round_up(x, m):
    return ((x + m - 1) // m) * m


def _cdiv(a, b):
    return -(-a // b)


def _mlp_residual_kernel(params_ref, xt_ref, o_ref, *, num_neuron):
    """One batch tile (rows of 128 lanes).

    params_ref : SMEM f32[5*H + 1]      packed as [w1 (3,H) row-major | b1 (H,) | w2 (H,) | b2]
    xt_ref     : VMEM f32[3, R_T, 128]  feature-major x tile (axis 0 = the 3 input features)
    o_ref      : VMEM f32[R_T, 128]     output tile (dense: all sublanes & lanes used)
    """
    H = num_neuron

    x0 = xt_ref[0]  # (R_T, 128) -- feature 0, also the residual `cur = x[:, :1]`
    x1 = xt_ref[1]
    x2 = xt_ref[2]

    # Start from the fc2 bias (scalar broadcast from SMEM).
    acc = jnp.full(o_ref.shape, params_ref[5 * H], dtype=jnp.float32)

    # Unrolled VPU FMAs over the H hidden units (static Python loop; H is tiny).
    for j in range(H):
        w1_0j = params_ref[0 * H + j]
        w1_1j = params_ref[1 * H + j]
        w1_2j = params_ref[2 * H + j]
        b1_j = params_ref[3 * H + j]
        w2_j = params_ref[4 * H + j]

        h = x0 * w1_0j + x1 * w1_1j + x2 * w1_2j + b1_j
        h = jnp.maximum(h, 0.0)          # ReLU; Dropout(p=0) is identity
        acc = acc + h * w2_j             # fc2 contribution of hidden unit j

    o_ref[...] = acc + x0                # + residual x[:, :1]


def _pack_params(w1, b1, w2, b2):
    return jnp.concatenate(
        [w1.reshape(-1), b1.reshape(-1), w2.reshape(-1), b2.reshape(-1)]
    ).astype(jnp.float32)


def base_forward_feature_major(xt, n, w1, b1, w2, b2, *, max_rows=4096):
    """Pallas path on pre-reshaped input.

    xt : f32[3, R_pad, 128]  feature-major, batch laid out as rows of 128 lanes
                             (batch element b lives at [:, b // 128, b % 128]).
    n  : true batch size (<= R_pad * 128).  Returns f32[n, 1].
    """
    H = w1.shape[1]
    _, r_pad_in, _ = xt.shape

    r = _cdiv(max(n, 1), 128)
    n_steps = max(1, _cdiv(r, max_rows))
    if n_steps == 1 and r >= 16:
        n_steps = 2                       # >= 2 steps so v7x megacore sharding engages
    r_tile = _round_up(_cdiv(r, n_steps), 8)
    r_pad = n_steps * r_tile

    if r_pad_in < r_pad:
        xt = jnp.pad(xt, ((0, 0), (0, r_pad - r_pad_in), (0, 0)))
    elif r_pad_in > r_pad:
        r_pad = _round_up(r_pad_in, 8)
        r_tile = r_pad // n_steps if r_pad % n_steps == 0 else r_pad
        n_steps = r_pad // r_tile
        if r_pad_in < r_pad:
            xt = jnp.pad(xt, ((0, 0), (0, r_pad - r_pad_in), (0, 0)))

    params = _pack_params(w1, b1, w2, b2)

    # Roofline hints: 12 B read + 4 B written per lane; ~9 flops per hidden unit per lane.
    n_lanes = r_pad * 128
    cost = pl.CostEstimate(
        flops=(9 * H + 1) * n_lanes,
        transcendentals=0,
        bytes_accessed=16 * n_lanes,
    )

    # Double-buffered footprint: 2 * (3 + 1) * r_tile * 128 * 4 B  (<= 16 MiB at r_tile=4096).
    vmem_bytes = max(32 << 20, 4 * (3 + 1) * r_tile * 128 * 4)

    out = pl.pallas_call(
        functools.partial(_mlp_residual_kernel, num_neuron=H),
        out_shape=jax.ShapeDtypeStruct((r_pad, 128), jnp.float32),
        grid=(n_steps,),
        in_specs=[
            # Packed parameters live in SMEM (scalar broadcasts are free on the VPU).
            pl.BlockSpec(memory_space=pltpu.MemorySpace.SMEM),
            # Streamed x tile: (3, r_tile, 128); first dim equals the full array dim (3).
            pl.BlockSpec((3, r_tile, 128), lambda i: (0, i, 0)),
        ],
        out_specs=pl.BlockSpec((r_tile, 128), lambda i: (i, 0)),
        compiler_params=pltpu.CompilerParams(
            dimension_semantics=("parallel",),   # megacore sharding on v7x
            vmem_limit_bytes=int(vmem_bytes),
        ),
        cost_estimate=cost,
    )(params, xt)

    return out.reshape(-1)[:n].reshape(n, 1)


def base_forward(x, w1, b1, w2, b2, *, max_rows=4096, min_kernel_batch=16384):
    """x: (N, 3) f32; w1: (3, H); b1: (1, H); w2: (H, 1); b2: (1, 1) -> (N, 1)."""
    n = x.shape[0]

    # Small-batch fallback: a fused XLA expression beats kernel launch + pipeline
    # fixed cost at small N.  (Set min_kernel_batch=0 to force the Pallas path.)
    if n < min_kernel_batch:
        x32 = x.astype(jnp.float32)
        return (jnp.maximum(x32 @ w1 + b1, 0.0) @ w2 + b2 + x32[:, :1]).astype(jnp.float32)

    # Pad batch only slightly (to the per-step row granularity), then one transpose+reshape
    # into the dense feature-major layout.  TODO(synk): if callers can supply x already in
    # (3, R, 128) layout, use base_forward_feature_major directly and skip this transpose.
    r = _cdiv(n, 128)
    n_steps = max(1, _cdiv(r, max_rows))
    if n_steps == 1 and r >= 16:
        n_steps = 2
    r_tile = _round_up(_cdiv(r, n_steps), 8)
    r_pad = n_steps * r_tile
    n_pad = r_pad * 128

    x_pad = jnp.pad(x.astype(jnp.float32), ((0, n_pad - n), (0, 0)))
    xt = x_pad.T.reshape(3, r_pad, 128)

    return base_forward_feature_major(xt, n, w1, b1, w2, b2, max_rows=max_rows)


def init_params(key, num_neuron=4):
    """Deterministic xavier_uniform_ weights, zero biases (matches initialize_weights)."""
    k1, k2 = jax.random.split(key)
    # fc1: torch weight shape (num_neuron, 3); xavier bound = sqrt(6 / (fan_in + fan_out))
    bound1 = math.sqrt(6.0 / (3 + num_neuron))
    w1_t = jax.random.uniform(k1, (num_neuron, 3), jnp.float32, -bound1, bound1)
    # fc2: torch weight shape (1, num_neuron)
    bound2 = math.sqrt(6.0 / (num_neuron + 1))
    w2_t = jax.random.uniform(k2, (1, num_neuron), jnp.float32, -bound2, bound2)
    w1 = w1_t.T                                  # (3, num_neuron)
    b1 = jnp.zeros((1, num_neuron), jnp.float32)
    w2 = w2_t.T                                  # (num_neuron, 1)
    b2 = jnp.zeros((1, 1), jnp.float32)
    return w1, b1, w2, b2


def _reference(x, w1, b1, w2, b2):
    return jnp.maximum(x @ w1 + b1, 0.0) @ w2 + b2 + x[:, :1]


if __name__ == "__main__":
    key = jax.random.PRNGKey(0)
    k_x1, k_x2, k_p = jax.random.split(key, 3)

    num_neuron = 4
    w1, b1, w2, b2 = init_params(k_p, num_neuron=num_neuron)

    # Small batch (module-scale example) -- force the Pallas path to exercise the kernel.
    batch = 8
    x = jax.random.normal(k_x1, (batch, 3), jnp.float32)
    out = jax.block_until_ready(
        base_forward(x, w1, b1, w2, b2, min_kernel_batch=0)
    )
    assert out.shape == (batch, 1)
    assert jnp.allclose(out, _reference(x, w1, b1, w2, b2), atol=1e-5, rtol=1e-5)

    # Larger batch: exercises the multi-step pipelined grid path (>= 2 steps => megacore).
    batch_l = 2500
    x_l = jax.random.normal(k_x2, (batch_l, 3), jnp.float32)
    out_l = jax.block_until_ready(
        base_forward(x_l, w1, b1, w2, b2, min_kernel_batch=0)
    )
    assert out_l.shape == (batch_l, 1)
    assert jnp.allclose(out_l, _reference(x_l, w1, b1, w2, b2), atol=1e-5, rtol=1e-5)

    # Default entry (small-batch fallback path) stays consistent with the reference.
    out_fb = jax.block_until_ready(base_forward(x_l, w1, b1, w2, b2))
    assert jnp.allclose(out_fb, _reference(x_l, w1, b1, w2, b2), atol=1e-5, rtol=1e-5)

    print("KERNEL_OK")
</pallas_src>

<mosaic_0001>
module attributes {stable_mosaic.version = 11 : i64} {
  func.func @_mlp_residual_kernel(%arg0: i32, %arg1: memref<21xf32, #tpu.memory_space<smem>>, %arg2: memref<3x8x128xf32, #tpu.memory_space<vmem>>, %arg3: memref<8x128xf32, #tpu.memory_space<vmem>>) attributes {dimension_semantics = [#tpu.dimension_semantics<parallel>], iteration_bounds = array<i64: 1>, scalar_prefetch = 0 : i64, scratch_operands = 0 : i64, tpu.core_type = #tpu.core_type<tc>, window_params = [{transform_indices = @transform_0, window_bounds = array<i64: 21>}, {transform_indices = @transform_1, window_bounds = array<i64: 3, 8, 128>}, {transform_indices = @transform_2, window_bounds = array<i64: 8, 128>}]} {
    %c0 = arith.constant 0 : index
    %c0_0 = arith.constant 0 : index
    %c0_1 = arith.constant 0 : index
    %0 = vector.load %arg2[%c0, %c0_0, %c0_1] : memref<3x8x128xf32, #tpu.memory_space<vmem>>, vector<1x8x128xf32>
    %1 = vector.shape_cast %0 : vector<1x8x128xf32> to vector<8x128xf32>
    %c1 = arith.constant 1 : index
    %c0_2 = arith.constant 0 : index
    %c0_3 = arith.constant 0 : index
    %2 = vector.load %arg2[%c1, %c0_2, %c0_3] : memref<3x8x128xf32, #tpu.memory_space<vmem>>, vector<1x8x128xf32>
    %3 = vector.shape_cast %2 : vector<1x8x128xf32> to vector<8x128xf32>
    %c2 = arith.constant 2 : index
    %c0_4 = arith.constant 0 : index
    %c0_5 = arith.constant 0 : index
    %4 = vector.load %arg2[%c2, %c0_4, %c0_5] : memref<3x8x128xf32, #tpu.memory_space<vmem>>, vector<1x8x128xf32>
    %5 = vector.shape_cast %4 : vector<1x8x128xf32> to vector<8x128xf32>
    %c20 = arith.constant 20 : index
    %6 = memref.load %arg1[%c20] : memref<21xf32, #tpu.memory_space<smem>>
    %7 = vector.broadcast %6 : f32 to vector<8x128xf32>
    %c0_6 = arith.constant 0 : index
    %8 = memref.load %arg1[%c0_6] : memref<21xf32, #tpu.memory_space<smem>>
    %c4 = arith.constant 4 : index
    %9 = memref.load %arg1[%c4] : memref<21xf32, #tpu.memory_space<smem>>
    %c8 = arith.constant 8 : index
    %10 = memref.load %arg1[%c8] : memref<21xf32, #tpu.memory_space<smem>>
    %c12 = arith.constant 12 : index
    %11 = memref.load %arg1[%c12] : memref<21xf32, #tpu.memory_space<smem>>
    %c16 = arith.constant 16 : index
    %12 = memref.load %arg1[%c16] : memref<21xf32, #tpu.memory_space<smem>>
    %13 = vector.broadcast %8 : f32 to vector<8x128xf32>
    %14 = arith.mulf %1, %13 : vector<8x128xf32>
    %15 = vector.broadcast %9 : f32 to vector<8x128xf32>
    %16 = arith.mulf %3, %15 : vector<8x128xf32>
    %17 = arith.addf %14, %16 : vector<8x128xf32>
    %18 = vector.broadcast %10 : f32 to vector<8x128xf32>
    %19 = arith.mulf %5, %18 : vector<8x128xf32>
    %20 = arith.addf %17, %19 : vector<8x128xf32>
    %21 = vector.broadcast %11 : f32 to vector<8x128xf32>
    %22 = arith.addf %20, %21 : vector<8x128xf32>
    %cst = arith.constant 0.000000e+00 : f32
    %23 = vector.broadcast %cst : f32 to vector<8x128xf32>
    %24 = arith.maximumf %22, %23 : vector<8x128xf32>
    %25 = vector.broadcast %12 : f32 to vector<8x128xf32>
    %26 = arith.mulf %24, %25 : vector<8x128xf32>
    %27 = arith.addf %7, %26 : vector<8x128xf32>
    %c1_7 = arith.constant 1 : index
    %28 = memref.load %arg1[%c1_7] : memref<21xf32, #tpu.memory_space<smem>>
    %c5 = arith.constant 5 : index
    %29 = memref.load %arg1[%c5] : memref<21xf32, #tpu.memory_space<smem>>
    %c9 = arith.constant 9 : index
    %30 = memref.load %arg1[%c9] : memref<21xf32, #tpu.memory_space<smem>>
    %c13 = arith.constant 13 : index
    %31 = memref.load %arg1[%c13] : memref<21xf32, #tpu.memory_space<smem>>
    %c17 = arith.constant 17 : index
    %32 = memref.load %arg1[%c17] : memref<21xf32, #tpu.memory_space<smem>>
    %33 = vector.broadcast %28 : f32 to vector<8x128xf32>
    %34 = arith.mulf %1, %33 : vector<8x128xf32>
    %35 = vector.broadcast %29 : f32 to vector<8x128xf32>
    %36 = arith.mulf %3, %35 : vector<8x128xf32>
    %37 = arith.addf %34, %36 : vector<8x128xf32>
    %38 = vector.broadcast %30 : f32 to vector<8x128xf32>
    %39 = arith.mulf %5, %38 : vector<8x128xf32>
    %40 = arith.addf %37, %39 : vector<8x128xf32>
    %41 = vector.broadcast %31 : f32 to vector<8x128xf32>
    %42 = arith.addf %40, %41 : vector<8x128xf32>
    %cst_8 = arith.constant 0.000000e+00 : f32
    %43 = vector.broadcast %cst_8 : f32 to vector<8x128xf32>
    %44 = arith.maximumf %42, %43 : vector<8x128xf32>
    %45 = vector.broadcast %32 : f32 to vector<8x128xf32>
    %46 = arith.mulf %44, %45 : vector<8x128xf32>
    %47 = arith.addf %27, %46 : vector<8x128xf32>
    %c2_9 = arith.constant 2 : index
    %48 = memref.load %arg1[%c2_9] : memref<21xf32, #tpu.memory_space<smem>>
    %c6 = arith.constant 6 : index
    %49 = memref.load %arg1[%c6] : memref<21xf32, #tpu.memory_space<smem>>
    %c10 = arith.constant 10 : index
    %50 = memref.load %arg1[%c10] : memref<21xf32, #tpu.memory_space<smem>>
    %c14 = arith.constant 14 : index
    %51 = memref.load %arg1[%c14] : memref<21xf32, #tpu.memory_space<smem>>
    %c18 = arith.constant 18 : index
    %52 = memref.load %arg1[%c18] : memref<21xf32, #tpu.memory_space<smem>>
    %53 = vector.broadcast %48 : f32 to vector<8x128xf32>
    %54 = arith.mulf %1, %53 : vector<8x128xf32>
    %55 = vector.broadcast %49 : f32 to vector<8x128xf32>
    %56 = arith.mulf %3, %55 : vector<8x128xf32>
    %57 = arith.addf %54, %56 : vector<8x128xf32>
    %58 = vector.broadcast %50 : f32 to vector<8x128xf32>
    %59 = arith.mulf %5, %58 : vector<8x128xf32>
    %60 = arith.addf %57, %59 : vector<8x128xf32>
    %61 = vector.broadcast %51 : f32 to vector<8x128xf32>
    %62 = arith.addf %60, %61 : vector<8x128xf32>
    %cst_10 = arith.constant 0.000000e+00 : f32
    %63 = vector.broadcast %cst_10 : f32 to vector<8x128xf32>
    %64 = arith.maximumf %62, %63 : vector<8x128xf32>
    %65 = vector.broadcast %52 : f32 to vector<8x128xf32>
    %66 = arith.mulf %64, %65 : vector<8x128xf32>
    %67 = arith.addf %47, %66 : vector<8x128xf32>
    %c3 = arith.constant 3 : index
    %68 = memref.load %arg1[%c3] : memref<21xf32, #tpu.memory_space<smem>>
    %c7 = arith.constant 7 : index
    %69 = memref.load %arg1[%c7] : memref<21xf32, #tpu.memory_space<smem>>
    %c11 = arith.constant 11 : index
    %70 = memref.load %arg1[%c11] : memref<21xf32, #tpu.memory_space<smem>>
    %c15 = arith.constant 15 : index
    %71 = memref.load %arg1[%c15] : memref<21xf32, #tpu.memory_space<smem>>
    %c19 = arith.constant 19 : index
    %72 = memref.load %arg1[%c19] : memref<21xf32, #tpu.memory_space<smem>>
    %73 = vector.broadcast %68 : f32 to vector<8x128xf32>
    %74 = arith.mulf %1, %73 : vector<8x128xf32>
    %75 = vector.broadcast %69 : f32 to vector<8x128xf32>
    %76 = arith.mulf %3, %75 : vector<8x128xf32>
    %77 = arith.addf %74, %76 : vector<8x128xf32>
    %78 = vector.broadcast %70 : f32 to vector<8x128xf32>
    %79 = arith.mulf %5, %78 : vector<8x128xf32>
    %80 = arith.addf %77, %79 : vector<8x128xf32>
    %81 = vector.broadcast %71 : f32 to vector<8x128xf32>
    %82 = arith.addf %80, %81 : vector<8x128xf32>
    %cst_11 = arith.constant 0.000000e+00 : f32
    %83 = vector.broadcast %cst_11 : f32 to vector<8x128xf32>
    %84 = arith.maximumf %82, %83 : vector<8x128xf32>
    %85 = vector.broadcast %72 : f32 to vector<8x128xf32>
    %86 = arith.mulf %84, %85 : vector<8x128xf32>
    %87 = arith.addf %67, %86 : vector<8x128xf32>
    %88 = arith.addf %87, %1 : vector<8x128xf32>
    %c0_12 = arith.constant 0 : index
    %c0_13 = arith.constant 0 : index
    %89 = vector.load %arg3[%c0_12, %c0_13] : memref<8x128xf32, #tpu.memory_space<vmem>>, vector<8x128xf32>
    tpu.vector_store %arg3[%c0_12, %c0_13], %88 {strides = array<i32>} : memref<8x128xf32, #tpu.memory_space<vmem>>, vector<8x128xf32>,
    return
  }
  func.func @transform_0(%arg0: i32) -> i32 {
    %c0_i32 = arith.constant 0 : i32
    %c0_i32_0 = arith.constant 0 : i32
    return %c0_i32 : i32
  }
  func.func @transform_1(%arg0: i32) -> (i32, i32, i32) {
    %c0_i32 = arith.constant 0 : i32
    %c0_i32_0 = arith.constant 0 : i32
    %c0_i32_1 = arith.constant 0 : i32
    return %c0_i32, %arg0, %c0_i32_0 : i32, i32, i32
  }
  func.func @transform_2(%arg0: i32) -> (i32, i32) {
    %c0_i32 = arith.constant 0 : i32
    %c0_i32_0 = arith.constant 0 : i32
    return %arg0, %c0_i32 : i32, i32
  }
}

</mosaic_0001>

<llo_original>
// kernel: tpu_custom_call.1
$region0: #{tpu_custom_call.1}
  #allocation0 [shape = 'u32[]', space=smem, size = 0x4, offset = 0x4, fixed_abs, tag = 'smem constant byte address 0x4 - core index']
  #allocation1 [shape = 'u32[72,128]{1,0:T(1,128)}', space=vmem, size = 0x9000, scoped, tag = 'internal scratch']
  %s0 = inlined_call_operand.hbm [shape: f32[21], index: 0, kind: input, shape index: {}]
  %s1 = inlined_call_operand.hbm [shape: f32[3,8,128], index: 1, kind: input, shape index: {}]
  %s2 = inlined_call_operand.hbm [shape: f32[8,128], index: 2, kind: output, shape index: {}]
  %s3 = sld [smem:[#allocation0]]
  $region26: #{tpu_custom_call.1} parent=0
    _
  %s5 = ssub.s32 1, %s3
  %s6 = scalar_select 0, %s5, %s3
  $region1: #{tpu_custom_call.1} parent=0
    #allocation2 [shape = 'u8[512]{0}', space=smem, size = 0x200, scoped, tag = 'input window, operand 0, single buffered']
    #allocation3 [shape = 's32[1]{0}', space=sflag, size = 0x4, scoped, tag = 'scoped memory for tpu_custom_call.1']
    #allocation4 [shape = 's32[1]{0}', space=sflag, size = 0x4, scoped, tag = 'scoped memory for tpu_custom_call.1']
    #allocation5 [shape = 's32[1]{0}', space=sflag, size = 0x4, scoped, tag = 'scoped memory for tpu_custom_call.1']
    #allocation6 [shape = 'u8[12288]{0}', space=vmem, size = 0x3000, scoped, tag = 'input window, operand 1, single buffered']
    #allocation7 [shape = 'u8[4096]{0}', space=vmem, size = 0x1000, scoped, tag = 'output window, operand 0, single buffered']
    %7 = vsyncpa [#allocation5], 0
    %8 = vsyncpa [#allocation3], 0
    %9 = vsyncpa [#allocation4], 0
    // Predicated region
    $region2: #{tpu_custom_call.1} parent=1 // pred_check
      _
    $region3: #{tpu_custom_call.1} parent=1 // pred_check_branch
      %11 = sbr.rel (0) target = $region5
    $region4: #{tpu_custom_call.1} parent=1 // pred_region
      %13 = vsyncadd [#allocation5], 0
      %s15 = sshll.u32 %s0, 4
      %s16 = int_to_ptr.hbm [resolvable:$true] %s15
      %18 = dma.hbm_to_smem %s16, 16, [#allocation2], [#allocation5]
    $region5: #{tpu_custom_call.1} parent=1 // pred_fallthru
      _
    // Predicated region
    $region6: #{tpu_custom_call.1} parent=1 // pred_check
      _
    $region7: #{tpu_custom_call.1} parent=1 // pred_check_branch
      %20 = sbr.rel (0) target = $region9
    $region8: #{tpu_custom_call.1} parent=1 // pred_region
      %22 = vsyncadd [#allocation3], 0
      %s23 = sshll.u32 %s1, 4
      %s24 = int_to_ptr.hbm [resolvable:$true] %s23
      %s25 = sshll.u32 [#allocation6], 4
      %s26 = int_to_ptr.vmem [resolvable:$true] %s25
      %31 = dma.hbm_to_vmem [thread:$0]  %s24, 384, %s26, [#allocation3], 128, 128, 8
    $region9: #{tpu_custom_call.1} parent=1 // pred_fallthru
      _
    // Predicated region
    $region10: #{tpu_custom_call.1} parent=1 // pred_check
      _
    $region11: #{tpu_custom_call.1} parent=1 // pred_check_branch
      %33 = sbr.rel (0) target = $region13
    $region12: #{tpu_custom_call.1} parent=1 // pred_region
      %35 = dma.done [#allocation5], 16
    $region13: #{tpu_custom_call.1} parent=1 // pred_fallthru
      _
    // Predicated region
    $region14: #{tpu_custom_call.1} parent=1 // pred_check
      _
    $region15: #{tpu_custom_call.1} parent=1 // pred_check_branch
      %37 = sbr.rel (0) target = $region17
    $region16: #{tpu_custom_call.1} parent=1 // pred_region
      %39 = dma.done [#allocation3], 384
    $region17: #{tpu_custom_call.1} parent=1 // pred_fallthru
      _
    %40 = sfence
    %v41 = vld [vmem:[#allocation6] sm:$0xff]
    %s42 = scalar_lea.vmem [#allocation6], 8
    %v43 = vld [vmem:[%s42] sm:$0xff]
    %s44 = scalar_lea.vmem [#allocation6], 16
    %v45 = vld [vmem:[%s44] sm:$0xff]
    %s46 = sld [smem:[#allocation2 + $0x14]]
    %v47 = vstv %s46
    %s48 = sld [smem:[#allocation2]]
    %s49 = sld [smem:[#allocation2 + $0x4]]
    %s50 = sld [smem:[#allocation2 + $0x8]]
    %s51 = sld [smem:[#allocation2 + $0xc]]
    %s52 = sld [smem:[#allocation2 + $0x10]]
    %v53 = vstv %s48
    %v54 = vmul.f32 %v41, %v53
    %v55 = vstv %s49
    %v56 = vmul.f32 %v43, %v55
    %v57 = vadd.f32 %v54, %v56
    %v58 = vstv %s50
    %v59 = vmul.f32 %v45, %v58
    %v60 = vadd.f32 %v57, %v59
    %v61 = vstv %s51
    %v62 = vadd.f32 %v60, %v61
    %v63 = vmax.f32 %v62, 0.0
    %v64 = vstv %s52
    %v65 = vmul.f32 %v63, %v64
    %v66 = vadd.f32 %v47, %v65
    %s67 = sld [smem:[#allocation2 + $0x1]]
    %s68 = sld [smem:[#allocation2 + $0x5]]
    %s69 = sld [smem:[#allocation2 + $0x9]]
    %s70 = sld [smem:[#allocation2 + $0xd]]
    %s71 = sld [smem:[#allocation2 + $0x11]]
    %v72 = vstv %s67
    %v73 = vmul.f32 %v41, %v72
    %v74 = vstv %s68
    %v75 = vmul.f32 %v43, %v74
    %v76 = vadd.f32 %v73, %v75
    %v77 = vstv %s69
    %v78 = vmul.f32 %v45, %v77
    %v79 = vadd.f32 %v76, %v78
    %v80 = vstv %s70
    %v81 = vadd.f32 %v79, %v80
    %v82 = vmax.f32 %v81, 0.0
    %v83 = vstv %s71
    %v84 = vmul.f32 %v82, %v83
    %v85 = vadd.f32 %v66, %v84
    %s86 = sld [smem:[#allocation2 + $0x2]]
    %s87 = sld [smem:[#allocation2 + $0x6]]
    %s88 = sld [smem:[#allocation2 + $0xa]]
    %s89 = sld [smem:[#allocation2 + $0xe]]
    %s90 = sld [smem:[#allocation2 + $0x12]]
    %v91 = vstv %s86
    %v92 = vmul.f32 %v41, %v91
    %v93 = vstv %s87
    %v94 = vmul.f32 %v43, %v93
    %v95 = vadd.f32 %v92, %v94
    %v96 = vstv %s88
    %v97 = vmul.f32 %v45, %v96
    %v98 = vadd.f32 %v95, %v97
    %v99 = vstv %s89
    %v100 = vadd.f32 %v98, %v99
    %v101 = vmax.f32 %v100, 0.0
    %v102 = vstv %s90
    %v103 = vmul.f32 %v101, %v102
    %v104 = vadd.f32 %v85, %v103
    %s105 = sld [smem:[#allocation2 + $0x3]]
    %s106 = sld [smem:[#allocation2 + $0x7]]
    %s107 = sld [smem:[#allocation2 + $0xb]]
    %s108 = sld [smem:[#allocation2 + $0xf]]
    %s109 = sld [smem:[#allocation2 + $0x13]]
    %v110 = vstv %s105
    %v111 = vmul.f32 %v41, %v110
    %v112 = vstv %s106
    %v113 = vmul.f32 %v43, %v112
    %v114 = vadd.f32 %v111, %v113
    %v115 = vstv %s107
    %v116 = vmul.f32 %v45, %v115
    %v117 = vadd.f32 %v114, %v116
    %v118 = vstv %s108
    %v119 = vadd.f32 %v117, %v118
    %v120 = vmax.f32 %v119, 0.0
    %v121 = vstv %s109
    %v122 = vmul.f32 %v120, %v121
    %v123 = vadd.f32 %v104, %v122
    %v124 = vadd.f32 %v123, %v41
    %125 = vst [vmem:[#allocation7] sm:$0xff] %v124
    // Predicated region
    $region18: #{tpu_custom_call.1} parent=1 // pred_check
      _
    $region19: #{tpu_custom_call.1} parent=1 // pred_check_branch
      %127 = sbr.rel (0) target = $region21
    $region20: #{tpu_custom_call.1} parent=1 // pred_region
      %129 = vsyncadd [#allocation4], 0
      %s131 = sshll.u32 [#allocation7], 4
      %s132 = int_to_ptr.vmem [resolvable:$true] %s131
      %s133 = sshll.u32 %s2, 4
      %s134 = int_to_ptr.hbm [resolvable:$true] %s133
      %136 = dma.vmem_to_hbm [thread:$0]  %s132, 128, %s134, [#allocation4]
    $region21: #{tpu_custom_call.1} parent=1 // pred_fallthru
      _
    // Predicated region
    $region22: #{tpu_custom_call.1} parent=1 // pred_check
      _
    $region23: #{tpu_custom_call.1} parent=1 // pred_check_branch
      %138 = sbr.rel (0) target = $region25
    $region24: #{tpu_custom_call.1} parent=1 // pred_region
      %140 = dma.done [#allocation4], 128
    $region25: #{tpu_custom_call.1} parent=1 // pred_fallthru
      _
    %141 = vsyncpa [#allocation3], 1
    %142 = vsyncpa [#allocation4], 1
    %143 = vsyncpa [#allocation5], 1

</llo_original>
